<compile_context>
chip_gen: v7x
topology: tpu7x:2x2x1
jax: 0.10.0
libtpu: 0.0.40
codegen_flags: <defaults>
</compile_context>

<pallas_src>
import math

import jax
import jax.numpy as jnp
from jax import lax
from jax.experimental import pallas as pl
from jax.experimental.pallas import tpu as pltpu


_PREC = lax.Precision.HIGHEST  # all matmuls here are tiny -> exact f32 on MXU


# ----------------------------- in-kernel helpers -----------------------------

def _similarity(ctrl, key_mem):
    # control @ key_memory.T without materializing a transpose.
    return lax.dot_general(ctrl, key_mem, (((1,), (1,)), ((), ())),
                           precision=_PREC, preferred_element_type=jnp.float32)


def _softmax_last(x):
    # exact divide: the memory state compounds over T steps, so no approx recip.
    x = x - jnp.max(x, axis=-1, keepdims=True)
    e = jnp.exp(x)
    return e / jnp.sum(e, axis=-1, keepdims=True)


def _erase_add(ctrl, ea_wT, ea_b):
    # one packed MXU push for both projections, then a static lane split
    ea = jnp.dot(ctrl, ea_wT, precision=_PREC,
                 preferred_element_type=jnp.float32) + ea_b          # (B, 2D)
    d = ea.shape[-1] // 2
    return jax.nn.sigmoid(ea[:, :d]), jnp.tanh(ea[:, d:])


def _read_from(w, mem):
    # read[b, d] = sum_m w[b, m] * mem[b, m, d]
    return jnp.sum(w[:, :, None] * mem, axis=1)


def _apply_write(mem, w, erase, add):
    return (mem * (1.0 - w[:, :, None] * erase[:, None, :])
            + w[:, :, None] * add[:, None, :])


# ----------------------------- Pallas kernels --------------------------------

def _addressing_kernel(ctrl_ref, key_ref, out_ref):
    out_ref[...] = _softmax_last(_similarity(ctrl_ref[...], key_ref[...]))


def _read_kernel(w_ref, mem_ref, out_ref):
    out_ref[...] = _read_from(w_ref[...], mem_ref[...])


def _write_kernel(ctrl_ref, mem_ref, w_ref, ea_wT_ref, ea_b_ref, out_ref):
    erase, add = _erase_add(ctrl_ref[...], ea_wT_ref[...], ea_b_ref[...])
    out_ref[...] = _apply_write(mem_ref[...], w_ref[...], erase, add)


def _sequence_kernel(rctrl_ref, wctrl_ref, key_ref, mem0_ref, ea_wT_ref, ea_b_ref,
                     read_ref, mem_ref):
    """One DKVMN/SKVMN cell per grid step; value memory stays resident in VMEM."""
    t = pl.program_id(0)

    @pl.when(t == 0)
    def _():
        # load the initial memory into the resident output block once
        mem_ref[...] = mem0_ref[...]

    mem = mem_ref[...]                                               # (B, M, D)
    w = _softmax_last(_similarity(rctrl_ref[0], key_ref[...]))       # (B, M)

    # read uses the pre-write memory of this timestep
    read_ref[0] = _read_from(w, mem)                                 # (B, D)

    erase, add = _erase_add(wctrl_ref[0], ea_wT_ref[...], ea_b_ref[...])
    mem_ref[...] = _apply_write(mem, w, erase, add)


# ----------------------------- Python wrapper ---------------------------------

class DKVMNHeadGroup:
    """Pallas/TPU port of edustudio's DKVMNHeadGroup."""

    def __init__(self, memory_size, memory_state_dim, is_write, key=None,
                 device=None):
        del device  # torch API parity; JAX manages placement
        self.memory_size = memory_size
        self.memory_state_dim = memory_state_dim
        self.is_write = is_write
        D = memory_state_dim
        if self.is_write:
            if key is None:
                key = jax.random.PRNGKey(0)
            k_e, k_a = jax.random.split(key)
            std = math.sqrt(2.0 / D)            # kaiming_normal_, fan_in = D
            erase_w = jax.random.normal(k_e, (D, D), jnp.float32) * std
            add_w = jax.random.normal(k_a, (D, D), jnp.float32) * std
            # stored transposed (x @ W^T needs no in-kernel transpose) and packed
            # so erase + add cost one MXU push instead of two.
            self.ea_wT = jnp.concatenate([erase_w.T, add_w.T], axis=1)   # (D, 2D)
            self.ea_b = jnp.zeros((1, 2 * D), jnp.float32)

    # --- fused sequence: addressing + read + write for T steps, ONE launch -----
    def read_write_sequence(self, read_controls, key_memory, value_memory,
                            write_controls=None):
        """read_controls/write_controls: (T, B, D); value_memory: (B, M, D).

        Returns per-step reads (T, B, D) and the final memory (B, M, D); the
        value_memory HBM buffer is aliased to the memory output (in-place).
        """
        assert self.is_write
        if write_controls is None:
            write_controls = read_controls
        T, B, D = read_controls.shape
        M = self.memory_size
        reads, new_mem = pl.pallas_call(
            _sequence_kernel,
            grid=(T,),
            in_specs=[
                pl.BlockSpec((1, B, D), lambda t: (t, 0, 0)),   # read control / step
                pl.BlockSpec((1, B, D), lambda t: (t, 0, 0)),   # write control / step
                pl.BlockSpec((M, D), lambda t: (0, 0)),         # key memory (fetched once)
                pl.BlockSpec((B, M, D), lambda t: (0, 0, 0)),   # initial value memory (once)
                pl.BlockSpec((D, 2 * D), lambda t: (0, 0)),     # packed erase|add weights
                pl.BlockSpec((1, 2 * D), lambda t: (0, 0)),     # packed erase|add bias
            ],
            out_specs=(
                pl.BlockSpec((1, B, D), lambda t: (t, 0, 0)),   # per-step read
                pl.BlockSpec((B, M, D), lambda t: (0, 0, 0)),   # resident memory, 1 writeback
            ),
            out_shape=(
                jax.ShapeDtypeStruct((T, B, D), jnp.float32),
                jax.ShapeDtypeStruct((B, M, D), jnp.float32),
            ),
            input_output_aliases={3: 1},    # update the memory buffer in place
            compiler_params=pltpu.CompilerParams(
                dimension_semantics=("arbitrary",)),   # steps carry state -> sequential
        )(read_controls, write_controls, key_memory, value_memory,
          self.ea_wT, self.ea_b)
        return reads, new_mem

    # --- single-step fused path (grid of length 1) ------------------------------
    def read_write(self, control_input, key_memory, value_memory,
                   write_control_input=None):
        wc = None if write_control_input is None else write_control_input[None]
        reads, new_mem = self.read_write_sequence(control_input[None], key_memory,
                                                  value_memory, wc)
        return reads[0], new_mem

    # --- standalone API parity with the torch module ----------------------------
    def addressing(self, control_input, memory):
        B = control_input.shape[0]
        M = memory.shape[0]
        return pl.pallas_call(
            _addressing_kernel,
            out_shape=jax.ShapeDtypeStruct((B, M), jnp.float32),
        )(control_input, memory)

    def read(self, memory, control_input=None, read_weight=None):
        if read_weight is None:
            read_weight = self.addressing(control_input, memory)
        B, M, D = memory.shape
        return pl.pallas_call(
            _read_kernel,
            out_shape=jax.ShapeDtypeStruct((B, D), jnp.float32),
        )(read_weight, memory)

    def write(self, control_input, memory, write_weight=None):
        assert self.is_write
        if write_weight is None:
            write_weight = self.addressing(control_input, memory)
        B, M, D = memory.shape
        return pl.pallas_call(
            _write_kernel,
            out_shape=jax.ShapeDtypeStruct((B, M, D), jnp.float32),
        )(control_input, memory, write_weight, self.ea_wT, self.ea_b)

    def forward(self, input_):
        # original torch forward() is `pass`; real work is addressing/read/write
        pass


# ----------------------------- pure-JAX reference -----------------------------

def _ref_addressing(ctrl, key_mem):
    sim = jnp.matmul(ctrl, key_mem.T, precision=_PREC)
    return jax.nn.softmax(sim, axis=1)


def _ref_read(w, mem):
    return jnp.sum(w[:, :, None] * mem, axis=1)


def _ref_write(ctrl, mem, w, ea_wT, ea_b):
    ea = jnp.matmul(ctrl, ea_wT, precision=_PREC) + ea_b
    d = ea.shape[-1] // 2
    erase = jax.nn.sigmoid(ea[:, :d])
    add = jnp.tanh(ea[:, d:])
    return (mem * (1.0 - w[:, :, None] * erase[:, None, :])
            + w[:, :, None] * add[:, None, :])


def _ref_sequence(read_ctrls, write_ctrls, key_mem, mem0, ea_wT, ea_b):
    mem = mem0
    reads = []
    for t in range(read_ctrls.shape[0]):
        w = _ref_addressing(read_ctrls[t], key_mem)
        reads.append(_ref_read(w, mem))
        mem = _ref_write(write_ctrls[t], mem, w, ea_wT, ea_b)
    return jnp.stack(reads, axis=0), mem


# ----------------------------------- main --------------------------------------

if __name__ == "__main__":
    B, M, D, T = 8, 16, 32, 8   # batch, memory_size, memory_state_dim, seq length

    root = jax.random.PRNGKey(0)
    k_rc, k_wc, k_key, k_mem, k_params = jax.random.split(root, 5)
    read_ctrls = jax.random.normal(k_rc, (T, B, D), jnp.float32)
    write_ctrls = jax.random.normal(k_wc, (T, B, D), jnp.float32)
    key_memory = jax.random.normal(k_key, (M, D), jnp.float32)
    value_memory = jax.random.normal(k_mem, (B, M, D), jnp.float32)

    head = DKVMNHeadGroup(memory_size=M, memory_state_dim=D,
                          is_write=True, key=k_params)

    # references first (the fused calls alias/update the memory buffer in place)
    ref_w = _ref_addressing(read_ctrls[0], key_memory)
    ref_r = _ref_read(ref_w, value_memory)
    ref_m = _ref_write(write_ctrls[0], value_memory, ref_w, head.ea_wT, head.ea_b)
    ref_reads, ref_final = _ref_sequence(read_ctrls, write_ctrls, key_memory,
                                         value_memory, head.ea_wT, head.ea_b)

    tol = dict(atol=1e-3, rtol=1e-3)

    # ---- standalone API (one timestep, three launches) ----
    corr_w = jax.block_until_ready(head.addressing(read_ctrls[0], key_memory))
    read_sa = jax.block_until_ready(head.read(value_memory, read_weight=corr_w))
    mem_sa = jax.block_until_ready(head.write(write_ctrls[0], value_memory,
                                              write_weight=corr_w))
    assert jnp.allclose(corr_w, ref_w, **tol)
    assert jnp.allclose(read_sa, ref_r, **tol)
    assert jnp.allclose(mem_sa, ref_m, **tol)

    # ---- fused single step (one launch) ----
    read_1, mem_1 = head.read_write(read_ctrls[0], key_memory,
                                    jnp.copy(value_memory),
                                    write_control_input=write_ctrls[0])
    read_1 = jax.block_until_ready(read_1)
    mem_1 = jax.block_until_ready(mem_1)
    assert jnp.allclose(read_1, ref_r, **tol)
    assert jnp.allclose(mem_1, ref_m, **tol)

    # ---- fused full sequence: one launch for all T steps, memory resident in VMEM
    reads, final_mem = head.read_write_sequence(read_ctrls, key_memory,
                                                value_memory,
                                                write_controls=write_ctrls)
    reads = jax.block_until_ready(reads)
    final_mem = jax.block_until_ready(final_mem)
    assert jnp.allclose(reads, ref_reads, **tol)
    assert jnp.allclose(final_mem, ref_final, **tol)

    print("KERNEL_OK")
</pallas_src>

<mosaic_0001>
module attributes {stable_mosaic.version = 11 : i64} {
  func.func @_addressing_kernel(%arg0: memref<8x32xf32, #tpu.memory_space<vmem>>, %arg1: memref<16x32xf32, #tpu.memory_space<vmem>>, %arg2: memref<8x16xf32, #tpu.memory_space<vmem>>) attributes {dimension_semantics = [], scalar_prefetch = 0 : i64, scratch_operands = 0 : i64, tpu.core_type = #tpu.core_type<tc>} {
    %c0 = arith.constant 0 : index
    %c0_0 = arith.constant 0 : index
    %0 = vector.load %arg0[%c0, %c0_0] : memref<8x32xf32, #tpu.memory_space<vmem>>, vector<8x32xf32>
    %c0_1 = arith.constant 0 : index
    %c0_2 = arith.constant 0 : index
    %1 = vector.load %arg1[%c0_1, %c0_2] : memref<16x32xf32, #tpu.memory_space<vmem>>, vector<16x32xf32>
    %cst = arith.constant dense<0.000000e+00> : vector<8x16xf32>
    %2 = tpu.matmul %0, %1, %cst {dimension_numbers = #tpu.dot_dimension_numbers<[1], [1], [0], [0], [0, 0, 1, 0], [], []>, precision = #tpu.contract_precision<fp32>} : vector<8x32xf32>, vector<16x32xf32>, vector<8x16xf32> -> vector<8x16xf32>
    %cst_3 = arith.constant dense<0xFF800000> : vector<8xf32>
    %3 = vector.multi_reduction <maximumf>, %2, %cst_3 [1] : vector<8x16xf32> to vector<8xf32>
    %4 = vector.shape_cast %3 : vector<8xf32> to vector<8x1xf32>
    %5 = vector.broadcast %4 : vector<8x1xf32> to vector<8x16xf32>
    %6 = arith.subf %2, %5 : vector<8x16xf32>
    %7 = math.exp %6 : vector<8x16xf32>
    %cst_4 = arith.constant dense<0.000000e+00> : vector<8xf32>
    %8 = vector.multi_reduction <add>, %7, %cst_4 [1] : vector<8x16xf32> to vector<8xf32>
    %9 = vector.shape_cast %8 : vector<8xf32> to vector<8x1xf32>
    %10 = vector.broadcast %9 : vector<8x1xf32> to vector<8x16xf32>
    %11 = arith.divf %7, %10 : vector<8x16xf32>
    %c0_5 = arith.constant 0 : index
    %c0_6 = arith.constant 0 : index
    %12 = vector.load %arg2[%c0_5, %c0_6] : memref<8x16xf32, #tpu.memory_space<vmem>>, vector<8x16xf32>
    tpu.vector_store %arg2[%c0_5, %c0_6], %11 {strides = array<i32>} : memref<8x16xf32, #tpu.memory_space<vmem>>, vector<8x16xf32>,
    return
  }
}

</mosaic_0001>

<llo_original>
// kernel: tpu_custom_call.1
$region0: #{tpu_custom_call.1}
  #allocation0 [shape = 'u32[]', space=smem, size = 0x4, offset = 0x4, fixed_abs, tag = 'smem constant byte address 0x4 - core index']
  #allocation1 [shape = 'u32[144,128]{1,0:T(1,128)}', space=vmem, size = 0x12000, scoped, tag = 'internal scratch']
  %s0 = inlined_call_operand.hbm [shape: f32[8,32], index: 0, kind: input, shape index: {}]
  %s1 = inlined_call_operand.hbm [shape: f32[16,32], index: 1, kind: input, shape index: {}]
  %s2 = inlined_call_operand.hbm [shape: f32[8,16], index: 2, kind: output, shape index: {}]
  %s3 = sld [smem:[#allocation0]]
  $region26: #{tpu_custom_call.1} parent=0
    _
  %s5 = ssub.s32 1, %s3
  %s6 = scalar_select 0, %s5, %s3
  $region1: #{tpu_custom_call.1} parent=0
    #allocation2 [shape = 'u8[4096]{0}', space=vmem, size = 0x1000, scoped, tag = 'input window, operand 0, single buffered']
    #allocation3 [shape = 's32[1]{0}', space=sflag, size = 0x4, scoped, tag = 'scoped memory for tpu_custom_call.1']
    #allocation4 [shape = 's32[1]{0}', space=sflag, size = 0x4, scoped, tag = 'scoped memory for tpu_custom_call.1']
    #allocation5 [shape = 'u8[8192]{0}', space=vmem, size = 0x2000, scoped, tag = 'input window, operand 1, single buffered']
    #allocation6 [shape = 's32[1]{0}', space=sflag, size = 0x4, scoped, tag = 'scoped memory for tpu_custom_call.1']
    #allocation7 [shape = 'u8[4096]{0}', space=vmem, size = 0x1000, scoped, tag = 'output window, operand 0, single buffered']
    %7 = vsyncpa [#allocation3], 0
    %8 = vsyncpa [#allocation6], 0
    %9 = vsyncpa [#allocation4], 0
    // Predicated region
    $region2: #{tpu_custom_call.1} parent=1 // pred_check
      _
    $region3: #{tpu_custom_call.1} parent=1 // pred_check_branch
      %11 = sbr.rel (0) target = $region5
    $region4: #{tpu_custom_call.1} parent=1 // pred_region
      %s13 = ssub.s32 128, 128
      %14 = vsyncadd [#allocation3], %s13
      %s16 = sshll.u32 [#allocation2], 4
      %s17 = int_to_ptr.vmem [resolvable:$true] %s16
      %19 = dma.hbm_to_vmem [thread:$0]  %s0, 128, %s17, [#allocation3]
    $region5: #{tpu_custom_call.1} parent=1 // pred_fallthru
      _
    // Predicated region
    $region6: #{tpu_custom_call.1} parent=1 // pred_check
      _
    $region7: #{tpu_custom_call.1} parent=1 // pred_check_branch
      %21 = sbr.rel (0) target = $region9
    $region8: #{tpu_custom_call.1} parent=1 // pred_region
      %s23 = ssub.s32 256, 256
      %24 = vsyncadd [#allocation6], %s23
      %s25 = sshll.u32 [#allocation5], 4
      %s26 = int_to_ptr.vmem [resolvable:$true] %s25
      %31 = dma.hbm_to_vmem [thread:$0]  %s1, 256, %s26, [#allocation6], 128, 128, 8
    $region9: #{tpu_custom_call.1} parent=1 // pred_fallthru
      _
    // Predicated region
    $region10: #{tpu_custom_call.1} parent=1 // pred_check
      _
    $region11: #{tpu_custom_call.1} parent=1 // pred_check_branch
      %33 = sbr.rel (0) target = $region13
    $region12: #{tpu_custom_call.1} parent=1 // pred_region
      %34 = dma.done [#allocation3], 128
    $region13: #{tpu_custom_call.1} parent=1 // pred_fallthru
      _
    // Predicated region
    $region14: #{tpu_custom_call.1} parent=1 // pred_check
      _
    $region15: #{tpu_custom_call.1} parent=1 // pred_check_branch
      %36 = sbr.rel (0) target = $region17
    $region16: #{tpu_custom_call.1} parent=1 // pred_region
      %37 = dma.done [#allocation6], 256
    $region17: #{tpu_custom_call.1} parent=1 // pred_fallthru
      _
    %v38 = vld [vmem:[#allocation2] sm:$0xff]
    %v39 = vld [vmem:[#allocation5] sm:$0xff]
    %v40 = vld [vmem:[#allocation5 + $0x8] sm:$0xff]
    %vm41 = vcmask 261120
    %v43 = vsel %vm41, %v38, 0
    %v46 = vsel %vm41, %v39, 0
    %v49 = vsel %vm41, %v40, 0
    %51 = vmatprep.subr.mxu0 0.0
    %v52 = vand.u32 %v46, 4294901760
    %53 = vmatpush1.xpose.msra.mxu0 %v52
    %54 = vmatprep.subr.mxu0 0.0
    %v55 = vand.u32 %v49, 4294901760
    %56 = vmatpush1.xpose.msra.mxu0 %v55
    %57 = vmatprep.subr.mxu0 0.0
    %58 = vmatpush1.xpose.msra.mxu0 0.0
    %59 = vmatprep.subr.mxu0 0.0
    %60 = vmatpush1.xpose.msra.mxu0 0.0
    %61 = vmatprep.subr.mxu0 0.0
    %62 = vmatpush1.xpose.msra.mxu0 0.0
    %63 = vmatprep.subr.mxu0 0.0
    %64 = vmatpush1.xpose.msra.mxu0 0.0
    %65 = vmatprep.subr.mxu0 0.0
    %66 = vmatpush1.xpose.msra.mxu0 0.0
    %67 = vmatprep.subr.mxu0 0.0
    %68 = vmatpush1.xpose.msra.mxu0 0.0
    %69 = vmatprep.subr.mxu0 0.0
    %70 = vmatpush1.xpose.msra.mxu0 0.0
    %71 = vmatprep.subr.mxu0 0.0
    %72 = vmatpush1.xpose.msra.mxu0 0.0
    %73 = vmatprep.subr.mxu0 0.0
    %74 = vmatpush1.xpose.msra.mxu0 0.0
    %75 = vmatprep.subr.mxu0 0.0
    %76 = vmatpush1.xpose.msra.mxu0 0.0
    %77 = vmatprep.subr.mxu0 0.0
    %78 = vmatpush1.xpose.msra.mxu0 0.0
    %79 = vmatprep.subr.mxu0 0.0
    %80 = vmatpush1.xpose.msra.mxu0 0.0
    %81 = vmatprep.subr.mxu0 0.0
    %82 = vmatpush1.xpose.msra.mxu0 0.0
    %83 = vmatprep.subr.mxu0 0.0
    %84 = vmatpush1.xpose.msra.mxu0 0.0
    %85 = vmatprep.subr.mxu0 0.0
    %86 = vmatpush1.xpose.msra.mxu0 0.0
    %87 = vmatprep.subr.mxu0 0.0
    %88 = vmatpush1.xpose.msra.mxu0 0.0
    %89 = vmatprep.subr.mxu0 0.0
    %90 = vmatpush1.xpose.msra.mxu0 0.0
    %91 = vmatprep.subr.mxu0 0.0
    %92 = vmatpush1.xpose.msra.mxu0 0.0
    %93 = vmatprep.subr.mxu0 0.0
    %94 = vmatpush1.xpose.msra.mxu0 0.0
    %95 = vmatprep.subr.mxu0 0.0
    %96 = vmatpush1.xpose.msra.mxu0 0.0
    %97 = vmatprep.subr.mxu0 0.0
    %98 = vmatpush1.xpose.msra.mxu0 0.0
    %99 = vmatprep.subr.mxu0 0.0
    %100 = vmatpush1.xpose.msra.mxu0 0.0
    %101 = vmatprep.subr.mxu0 0.0
    %102 = vmatpush1.xpose.msra.mxu0 0.0
    %103 = vmatprep.subr.mxu0 0.0
    %104 = vmatpush1.xpose.msra.mxu0 0.0
    %105 = vmatprep.subr.mxu0 0.0
    %106 = vmatpush1.xpose.msra.mxu0 0.0
    %107 = vmatprep.subr.mxu0 0.0
    %108 = vmatpush1.xpose.msra.mxu0 0.0
    %109 = vmatprep.subr.mxu0 0.0
    %110 = vmatpush1.xpose.msra.mxu0 0.0
    %111 = vmatprep.subr.mxu0 0.0
    %112 = vmatpush1.xpose.msra.mxu0 0.0
    %113 = vmatprep.subr.mxu0 0.0
    %114 = vmatpush1.xpose.msra.mxu0 0.0
    %115 = vmatprep.subr.mxu0 0.0
    %116 = vmatpush1.xpose.msra.mxu0 0.0
    %117 = vmatprep.mubr.f32.mxu0 0.0
    %v118 = vand.u32 %v43, 4294901760
    %v119 = vsub.f32 %v43, %v118
    %v120 = vand.u32 %v119, 4294901760
    %v121 = vsub.f32 %v119, %v120
    %v122 = vand.u32 %v121, 4294901760
    %123 = vmatmul.mubr.f32.gmra.mrb[0].mxu0 %v122
    %v124 = vpop.f32.mrb[0].mxu0
    %v125 = vadd.f32 0.0, %v124
    %v126 = vpop.f32.mrb[0].mxu0
    %127 = vdwg.mxu0
    %128 = vmatprep.subr.mxu0 0.0
    %v129 = vand.u32 %v46, 4294901760
    %v130 = vsub.f32 %v46, %v129
    %v131 = vand.u32 %v130, 4294901760
    %v132 = vsub.f32 %v130, %v131
    %v133 = vand.u32 %v132, 4294901760
    %134 = vmatpush1.xpose.msra.mxu0 %v133
    %135 = vmatprep.subr.mxu0 0.0
    %v136 = vand.u32 %v49, 4294901760
    %v137 = vsub.f32 %v49, %v136
    %v138 = vand.u32 %v137, 4294901760
    %v139 = vsub.f32 %v137, %v138
    %v140 = vand.u32 %v139, 4294901760
    %141 = vmatpush1.xpose.msra.mxu0 %v140
    %142 = vmatprep.subr.mxu0 0.0
    %143 = vmatpush1.xpose.msra.mxu0 0.0
    %144 = vmatprep.subr.mxu0 0.0
    %145 = vmatpush1.xpose.msra.mxu0 0.0
    %146 = vmatprep.subr.mxu0 0.0
    %147 = vmatpush1.xpose.msra.mxu0 0.0
    %148 = vmatprep.subr.mxu0 0.0
    %149 = vmatpush1.xpose.msra.mxu0 0.0
    %150 = vmatprep.subr.mxu0 0.0
    %151 = vmatpush1.xpose.msra.mxu0 0.0
    %152 = vmatprep.subr.mxu0 0.0
    %153 = vmatpush1.xpose.msra.mxu0 0.0
    %154 = vmatprep.subr.mxu0 0.0
    %155 = vmatpush1.xpose.msra.mxu0 0.0
    %156 = vmatprep.subr.mxu0 0.0
    %157 = vmatpush1.xpose.msra.mxu0 0.0
    %158 = vmatprep.subr.mxu0 0.0
    %159 = vmatpush1.xpose.msra.mxu0 0.0
    %160 = vmatprep.subr.mxu0 0.0
    %161 = vmatpush1.xpose.msra.mxu0 0.0
    %162 = vmatprep.subr.mxu0 0.0
    %163 = vmatpush1.xpose.msra.mxu0 0.0
    %164 = vmatprep.subr.mxu0 0.0
    %165 = vmatpush1.xpose.msra.mxu0 0.0
    %166 = vmatprep.subr.mxu0 0.0
    %167 = vmatpush1.xpose.msra.mxu0 0.0
    %168 = vmatprep.subr.mxu0 0.0
    %169 = vmatpush1.xpose.msra.mxu0 0.0
    %170 = vmatprep.subr.mxu0 0.0
    %171 = vmatpush1.xpose.msra.mxu0 0.0
    %172 = vmatprep.subr.mxu0 0.0
    %173 = vmatpush1.xpose.msra.mxu0 0.0
    %174 = vmatprep.subr.mxu0 0.0
    %175 = vmatpush1.xpose.msra.mxu0 0.0
    %176 = vmatprep.subr.mxu0 0.0
    %177 = vmatpush1.xpose.msra.mxu0 0.0
    %178 = vmatprep.subr.mxu0 0.0
    %179 = vmatpush1.xpose.msra.mxu0 0.0
    %180 = vmatprep.subr.mxu0 0.0
    %181 = vmatpush1.xpose.msra.mxu0 0.0
    %182 = vmatprep.subr.mxu0 0.0
    %183 = vmatpush1.xpose.msra.mxu0 0.0
    %184 = vmatprep.subr.mxu0 0.0
    %185 = vmatpush1.xpose.msra.mxu0 0.0
    %186 = vmatprep.subr.mxu0 0.0
    %187 = vmatpush1.xpose.msra.mxu0 0.0
    %188 = vmatprep.subr.mxu0 0.0
    %189 = vmatpush1.xpose.msra.mxu0 0.0
    %190 = vmatprep.subr.mxu0 0.0
    %191 = vmatpush1.xpose.msra.mxu0 0.0
    %192 = vmatprep.subr.mxu0 0.0
    %193 = vmatpush1.xpose.msra.mxu0 0.0
    %194 = vmatprep.subr.mxu0 0.0
    %195 = vmatpush1.xpose.msra.mxu0 0.0
    %196 = vmatprep.subr.mxu0 0.0
    %197 = vmatpush1.xpose.msra.mxu0 0.0
    %198 = vmatprep.subr.mxu0 0.0
    %199 = vmatpush1.xpose.msra.mxu0 0.0
    %200 = vmatprep.subr.mxu0 0.0
    %201 = vmatpush1.xpose.msra.mxu0 0.0
    %202 = vmatprep.mubr.f32.mxu0 0.0
    %v203 = vand.u32 %v43, 4294901760
    %204 = vmatmul.mubr.f32.gmra.mrb[0].mxu0 %v203
    %v205 = vpop.f32.mrb[0].mxu0
    %v206 = vadd.f32 %v125, %v205
    %v207 = vpop.f32.mrb[0].mxu0
    %208 = vdwg.mxu0
    %209 = vmatprep.subr.mxu0 0.0
    %v210 = vand.u32 %v46, 4294901760
    %v211 = vsub.f32 %v46, %v210
    %212 = vmatpush1.xpose.msra.mxu0 %v211
    %213 = vmatprep.subr.mxu0 0.0
    %v214 = vand.u32 %v49, 4294901760
    %v215 = vsub.f32 %v49, %v214
    %216 = vmatpush1.xpose.msra.mxu0 %v215
    %217 = vmatprep.subr.mxu0 0.0
    %218 = vmatpush1.xpose.msra.mxu0 0.0
    %219 = vmatprep.subr.mxu0 0.0
    %220 = vmatpush1.xpose.msra.mxu0 0.0
    %221 = vmatprep.subr.mxu0 0.0
    %222 = vmatpush1.xpose.msra.mxu0 0.0
    %223 = vmatprep.subr.mxu0 0.0
    %224 = vmatpush1.xpose.msra.mxu0 0.0
    %225 = vmatprep.subr.mxu0 0.0
    %226 = vmatpush1.xpose.msra.mxu0 0.0
    %227 = vmatprep.subr.mxu0 0.0
    %228 = vmatpush1.xpose.msra.mxu0 0.0
    %229 = vmatprep.subr.mxu0 0.0
    %230 = vmatpush1.xpose.msra.mxu0 0.0
    %231 = vmatprep.subr.mxu0 0.0
    %232 = vmatpush1.xpose.msra.mxu0 0.0
    %233 = vmatprep.subr.mxu0 0.0
    %234 = vmatpush1.xpose.msra.mxu0 0.0
    %235 = vmatprep.subr.mxu0 0.0
    %236 = vmatpush1.xpose.msra.mxu0 0.0
    %237 = vmatprep.subr.mxu0 0.0
    %238 = vmatpush1.xpose.msra.mxu0 0.0
    %239 = vmatprep.subr.mxu0 0.0
    %240 = vmatpush1.xpose.msra.mxu0 0.0
    %241 = vmatprep.subr.mxu0 0.0
    %242 = vmatpush1.xpose.msra.mxu0 0.0
    %243 = vmatprep.subr.mxu0 0.0
    %244 = vmatpush1.xpose.msra.mxu0 0.0
    %245 = vmatprep.subr.mxu0 0.0
    %246 = vmatpush1.xpose.msra.mxu0 0.0
    %247 = vmatprep.subr.mxu0 0.0
    %248 = vmatpush1.xpose.msra.mxu0 0.0
    %249 = vmatprep.subr.mxu0 0.0
    %250 = vmatpush1.xpose.msra.mxu0 0.0
    %251 = vmatprep.subr.mxu0 0.0
    %252 = vmatpush1.xpose.msra.mxu0 0.0
    %253 = vmatprep.subr.mxu0 0.0
    %254 = vmatpush1.xpose.msra.mxu0 0.0
    %255 = vmatprep.subr.mxu0 0.0
    %256 = vmatpush1.xpose.msra.mxu0 0.0
    %257 = vmatprep.subr.mxu0 0.0
    %258 = vmatpush1.xpose.msra.mxu0 0.0
    %259 = vmatprep.subr.mxu0 0.0
    %260 = vmatpush1.xpose.msra.mxu0 0.0
    %261 = vmatprep.subr.mxu0 0.0
    %262 = vmatpush1.xpose.msra.mxu0 0.0
    %263 = vmatprep.subr.mxu0 0.0
    %264 = vmatpush1.xpose.msra.mxu0 0.0
    %265 = vmatprep.subr.mxu0 0.0
    %266 = vmatpush1.xpose.msra.mxu0 0.0
    %267 = vmatprep.subr.mxu0 0.0
    %268 = vmatpush1.xpose.msra.mxu0 0.0
    %269 = vmatprep.subr.mxu0 0.0
    %270 = vmatpush1.xpose.msra.mxu0 0.0
    %271 = vmatprep.subr.mxu0 0.0
    %272 = vmatpush1.xpose.msra.mxu0 0.0
    %273 = vmatprep.subr.mxu0 0.0
    %274 = vmatpush1.xpose.msra.mxu0 0.0
    %275 = vmatprep.subr.mxu0 0.0
    %276 = vmatpush1.xpose.msra.mxu0 0.0
    %277 = vmatprep.mubr.f32.mxu0 0.0
    %v278 = vand.u32 %v43, 4294901760
    %v279 = vsub.f32 %v43, %v278
    %280 = vmatmul.mubr.f32.gmra.mrb[0].mxu0 %v279
    %v281 = vpop.f32.mrb[0].mxu0
    %v282 = vadd.f32 %v206, %v281
    %v283 = vpop.f32.mrb[0].mxu0
    %284 = vdwg.mxu0
    %285 = vmatprep.subr.mxu0 0.0
    %v286 = vand.u32 %v46, 4294901760
    %287 = vmatpush1.xpose.msra.mxu0 %v286
    %288 = vmatprep.subr.mxu0 0.0
    %v289 = vand.u32 %v49, 4294901760
    %290 = vmatpush1.xpose.msra.mxu0 %v289
    %291 = vmatprep.subr.mxu0 0.0
    %292 = vmatpush1.xpose.msra.mxu0 0.0
    %293 = vmatprep.subr.mxu0 0.0
    %294 = vmatpush1.xpose.msra.mxu0 0.0
    %295 = vmatprep.subr.mxu0 0.0
    %296 = vmatpush1.xpose.msra.mxu0 0.0
    %297 = vmatprep.subr.mxu0 0.0
    %298 = vmatpush1.xpose.msra.mxu0 0.0
    %299 = vmatprep.subr.mxu0 0.0
    %300 = vmatpush1.xpose.msra.mxu0 0.0
    %301 = vmatprep.subr.mxu0 0.0
    %302 = vmatpush1.xpose.msra.mxu0 0.0
    %303 = vmatprep.subr.mxu0 0.0
    %304 = vmatpush1.xpose.msra.mxu0 0.0
    %305 = vmatprep.subr.mxu0 0.0
    %306 = vmatpush1.xpose.msra.mxu0 0.0
    %307 = vmatprep.subr.mxu0 0.0
    %308 = vmatpush1.xpose.msra.mxu0 0.0
    %309 = vmatprep.subr.mxu0 0.0
    %310 = vmatpush1.xpose.msra.mxu0 0.0
    %311 = vmatprep.subr.mxu0 0.0
    %312 = vmatpush1.xpose.msra.mxu0 0.0
    %313 = vmatprep.subr.mxu0 0.0
    %314 = vmatpush1.xpose.msra.mxu0 0.0
    %315 = vmatprep.subr.mxu0 0.0
    %316 = vmatpush1.xpose.msra.mxu0 0.0
    %317 = vmatprep.subr.mxu0 0.0
    %318 = vmatpush1.xpose.msra.mxu0 0.0
    %319 = vmatprep.subr.mxu0 0.0
    %320 = vmatpush1.xpose.msra.mxu0 0.0
    %321 = vmatprep.subr.mxu0 0.0
    %322 = vmatpush1.xpose.msra.mxu0 0.0
    %323 = vmatprep.subr.mxu0 0.0
    %324 = vmatpush1.xpose.msra.mxu0 0.0
    %325 = vmatprep.subr.mxu0 0.0
    %326 = vmatpush1.xpose.msra.mxu0 0.0
    %327 = vmatprep.subr.mxu0 0.0
    %328 = vmatpush1.xpose.msra.mxu0 0.0
    %329 = vmatprep.subr.mxu0 0.0
    %330 = vmatpush1.xpose.msra.mxu0 0.0
    %331 = vmatprep.subr.mxu0 0.0
    %332 = vmatpush1.xpose.msra.mxu0 0.0
    %333 = vmatprep.subr.mxu0 0.0
    %334 = vmatpush1.xpose.msra.mxu0 0.0
    %335 = vmatprep.subr.mxu0 0.0
    %336 = vmatpush1.xpose.msra.mxu0 0.0
    %337 = vmatprep.subr.mxu0 0.0
    %338 = vmatpush1.xpose.msra.mxu0 0.0
    %339 = vmatprep.subr.mxu0 0.0
    %340 = vmatpush1.xpose.msra.mxu0 0.0
    %341 = vmatprep.subr.mxu0 0.0
    %342 = vmatpush1.xpose.msra.mxu0 0.0
    %343 = vmatprep.subr.mxu0 0.0
    %344 = vmatpush1.xpose.msra.mxu0 0.0
    %345 = vmatprep.subr.mxu0 0.0
    %346 = vmatpush1.xpose.msra.mxu0 0.0
    %347 = vmatprep.subr.mxu0 0.0
    %348 = vmatpush1.xpose.msra.mxu0 0.0
    %349 = vmatprep.subr.mxu0 0.0
    %350 = vmatpush1.xpose.msra.mxu0 0.0
    %351 = vmatprep.mubr.f32.mxu0 0.0
    %v352 = vand.u32 %v43, 4294901760
    %v353 = vsub.f32 %v43, %v352
    %v354 = vand.u32 %v353, 4294901760
    %355 = vmatmul.mubr.f32.gmra.mrb[0].mxu0 %v354
    %v356 = vpop.f32.mrb[0].mxu0
    %v357 = vadd.f32 %v282, %v356
    %v358 = vpop.f32.mrb[0].mxu0
    %359 = vdwg.mxu0
    %360 = vmatprep.subr.mxu0 0.0
    %v361 = vand.u32 %v46, 4294901760
    %v362 = vsub.f32 %v46, %v361
    %v363 = vand.u32 %v362, 4294901760
    %364 = vmatpush1.xpose.msra.mxu0 %v363
    %365 = vmatprep.subr.mxu0 0.0
    %v366 = vand.u32 %v49, 4294901760
    %v367 = vsub.f32 %v49, %v366
    %v368 = vand.u32 %v367, 4294901760
    %369 = vmatpush1.xpose.msra.mxu0 %v368
    %370 = vmatprep.subr.mxu0 0.0
    %371 = vmatpush1.xpose.msra.mxu0 0.0
    %372 = vmatprep.subr.mxu0 0.0
    %373 = vmatpush1.xpose.msra.mxu0 0.0
    %374 = vmatprep.subr.mxu0 0.0
    %375 = vmatpush1.xpose.msra.mxu0 0.0
    %376 = vmatprep.subr.mxu0 0.0
    %377 = vmatpush1.xpose.msra.mxu0 0.0
    %378 = vmatprep.subr.mxu0 0.0
    %379 = vmatpush1.xpose.msra.mxu0 0.0
    %380 = vmatprep.subr.mxu0 0.0
    %381 = vmatpush1.xpose.msra.mxu0 0.0
    %382 = vmatprep.subr.mxu0 0.0
    %383 = vmatpush1.xpose.msra.mxu0 0.0
    %384 = vmatprep.subr.mxu0 0.0
    %385 = vmatpush1.xpose.msra.mxu0 0.0
    %386 = vmatprep.subr.mxu0 0.0
    %387 = vmatpush1.xpose.msra.mxu0 0.0
    %388 = vmatprep.subr.mxu0 0.0
    %389 = vmatpush1.xpose.msra.mxu0 0.0
    %390 = vmatprep.subr.mxu0 0.0
    %391 = vmatpush1.xpose.msra.mxu0 0.0
    %392 = vmatprep.subr.mxu0 0.0
    %393 = vmatpush1.xpose.msra.mxu0 0.0
    %394 = vmatprep.subr.mxu0 0.0
    %395 = vmatpush1.xpose.msra.mxu0 0.0
    %396 = vmatprep.subr.mxu0 0.0
    %397 = vmatpush1.xpose.msra.mxu0 0.0
    %398 = vmatprep.subr.mxu0 0.0
    %399 = vmatpush1.xpose.msra.mxu0 0.0
    %400 = vmatprep.subr.mxu0 0.0
    %401 = vmatpush1.xpose.msra.mxu0 0.0
    %402 = vmatprep.subr.mxu0 0.0
    %403 = vmatpush1.xpose.msra.mxu0 0.0
    %404 = vmatprep.subr.mxu0 0.0
    %405 = vmatpush1.xpose.msra.mxu0 0.0
    %406 = vmatprep.subr.mxu0 0.0
    %407 = vmatpush1.xpose.msra.mxu0 0.0
    %408 = vmatprep.subr.mxu0 0.0
    %409 = vmatpush1.xpose.msra.mxu0 0.0
    %410 = vmatprep.subr.mxu0 0.0
    %411 = vmatpush1.xpose.msra.mxu0 0.0
    %412 = vmatprep.subr.mxu0 0.0
    %413 = vmatpush1.xpose.msra.mxu0 0.0
    %414 = vmatprep.subr.mxu0 0.0
    %415 = vmatpush1.xpose.msra.mxu0 0.0
    %416 = vmatprep.subr.mxu0 0.0
    %417 = vmatpush1.xpose.msra.mxu0 0.0
    %418 = vmatprep.subr.mxu0 0.0
    %419 = vmatpush1.xpose.msra.mxu0 0.0
    %420 = vmatprep.subr.mxu0 0.0
    %421 = vmatpush1.xpose.msra.mxu0 0.0
    %422 = vmatprep.subr.mxu0 0.0
    %423 = vmatpush1.xpose.msra.mxu0 0.0
    %424 = vmatprep.subr.mxu0 0.0
    %425 = vmatpush1.xpose.msra.mxu0 0.0
    %426 = vmatprep.subr.mxu0 0.0
    %427 = vmatpush1.xpose.msra.mxu0 0.0
    %428 = vmatprep.subr.mxu0 0.0
    %429 = vmatpush1.xpose.msra.mxu0 0.0
    %430 = vmatprep.mubr.f32.mxu0 0.0
    %v431 = vand.u32 %v43, 4294901760
    %432 = vmatmul.mubr.f32.gmra.mrb[0].mxu0 %v431
    %v433 = vpop.f32.mrb[0].mxu0
    %v434 = vadd.f32 %v357, %v433
    %v435 = vpop.f32.mrb[0].mxu0
    %436 = vdwg.mxu0
    %437 = vmatprep.subr.mxu0 0.0
    %v438 = vand.u32 %v46, 4294901760
    %439 = vmatpush1.xpose.msra.mxu0 %v438
    %440 = vmatprep.subr.mxu0 0.0
    %v441 = vand.u32 %v49, 4294901760
    %442 = vmatpush1.xpose.msra.mxu0 %v441
    %443 = vmatprep.subr.mxu0 0.0
    %444 = vmatpush1.xpose.msra.mxu0 0.0
    %445 = vmatprep.subr.mxu0 0.0
    %446 = vmatpush1.xpose.msra.mxu0 0.0
    %447 = vmatprep.subr.mxu0 0.0
    %448 = vmatpush1.xpose.msra.mxu0 0.0
    %449 = vmatprep.subr.mxu0 0.0
    %450 = vmatpush1.xpose.msra.mxu0 0.0
    %451 = vmatprep.subr.mxu0 0.0
    %452 = vmatpush1.xpose.msra.mxu0 0.0
    %453 = vmatprep.subr.mxu0 0.0
    %454 = vmatpush1.xpose.msra.mxu0 0.0
    %455 = vmatprep.subr.mxu0 0.0
    %456 = vmatpush1.xpose.msra.mxu0 0.0
    %457 = vmatprep.subr.mxu0 0.0
    %458 = vmatpush1.xpose.msra.mxu0 0.0
    %459 = vmatprep.subr.mxu0 0.0
    %460 = vmatpush1.xpose.msra.mxu0 0.0
    %461 = vmatprep.subr.mxu0 0.0
    %462 = vmatpush1.xpose.msra.mxu0 0.0
    %463 = vmatprep.subr.mxu0 0.0
    %464 = vmatpush1.xpose.msra.mxu0 0.0
    %465 = vmatprep.subr.mxu0 0.0
    %466 = vmatpush1.xpose.msra.mxu0 0.0
    %467 = vmatprep.subr.mxu0 0.0
    %468 = vmatpush1.xpose.msra.mxu0 0.0
    %469 = vmatprep.subr.mxu0 0.0
    %470 = vmatpush1.xpose.msra.mxu0 0.0
    %471 = vmatprep.subr.mxu0 0.0
    %472 = vmatpush1.xpose.msra.mxu0 0.0
    %473 = vmatprep.subr.mxu0 0.0
    %474 = vmatpush1.xpose.msra.mxu0 0.0
    %475 = vmatprep.subr.mxu0 0.0
    %476 = vmatpush1.xpose.msra.mxu0 0.0
    %477 = vmatprep.subr.mxu0 0.0
    %478 = vmatpush1.xpose.msra.mxu0 0.0
    %479 = vmatprep.subr.mxu0 0.0
    %480 = vmatpush1.xpose.msra.mxu0 0.0
    %481 = vmatprep.subr.mxu0 0.0
    %482 = vmatpush1.xpose.msra.mxu0 0.0
    %483 = vmatprep.subr.mxu0 0.0
    %484 = vmatpush1.xpose.msra.mxu0 0.0
    %485 = vmatprep.subr.mxu0 0.0
    %486 = vmatpush1.xpose.msra.mxu0 0.0
    %487 = vmatprep.subr.mxu0 0.0
    %488 = vmatpush1.xpose.msra.mxu0 0.0
    %489 = vmatprep.subr.mxu0 0.0
    %490 = vmatpush1.xpose.msra.mxu0 0.0
    %491 = vmatprep.subr.mxu0 0.0
    %492 = vmatpush1.xpose.msra.mxu0 0.0
    %493 = vmatprep.subr.mxu0 0.0
    %494 = vmatpush1.xpose.msra.mxu0 0.0
    %495 = vmatprep.subr.mxu0 0.0
    %496 = vmatpush1.xpose.msra.mxu0 0.0
    %497 = vmatprep.subr.mxu0 0.0
    %498 = vmatpush1.xpose.msra.mxu0 0.0
    %499 = vmatprep.subr.mxu0 0.0
    %500 = vmatpush1.xpose.msra.mxu0 0.0
    %501 = vmatprep.subr.mxu0 0.0
    %502 = vmatpush1.xpose.msra.mxu0 0.0
    %503 = vmatprep.mubr.f32.mxu0 0.0
    %v504 = vand.u32 %v43, 4294901760
    %505 = vmatmul.mubr.f32.gmra.mrb[0].mxu0 %v504
    %v506 = vpop.f32.mrb[0].mxu0
    %v507 = vadd.f32 %v434, %v506
    %v508 = vpop.f32.mrb[0].mxu0
    %509 = vdwg.mxu0
    %vm510 = vcmask 130048
    %v511 = vsel %vm510, %v507, -inf
    %512 = vmax.xlane.f32.xlu0 %v511
    %v513 = vpop.xlane.xlu0 %512
    %v514 = vsub.f32 %v507, %v513
    %v515 = vmul.f32 %v514, 1.442695
    %v516 = vpow.pop %v515
    %v517 = vsel %vm510, %v516, 0.0
    %518 = vadd.xlane.f32.xlu0 %v517
    %v519 = vpop.xlane.xlu0 %518
    %v520 = vrcp.pop %v519
    %v521 = vmul.f32 %v516, %v520
    %522 = vst.msk [vmem:[#allocation7] sm:$0xff] %vm510, %v521
    // Predicated region
    $region18: #{tpu_custom_call.1} parent=1 // pred_check
      _
    $region19: #{tpu_custom_call.1} parent=1 // pred_check_branch
      %524 = sbr.rel (0) target = $region21
    $region20: #{tpu_custom_call.1} parent=1 // pred_region
      %s526 = ssub.s32 128, 128
      %527 = vsyncadd [#allocation4], %s526
      %s529 = sshll.u32 [#allocation7], 4
      %s530 = int_to_ptr.vmem [resolvable:$true] %s529
      %532 = dma.vmem_to_hbm [thread:$0]  %s530, 128, %s2, [#allocation4]
    $region21: #{tpu_custom_call.1} parent=1 // pred_fallthru
      _
    // Predicated region
    $region22: #{tpu_custom_call.1} parent=1 // pred_check
      _
    $region23: #{tpu_custom_call.1} parent=1 // pred_check_branch
      %534 = sbr.rel (0) target = $region25
    $region24: #{tpu_custom_call.1} parent=1 // pred_region
      %535 = dma.done [#allocation4], 128
    $region25: #{tpu_custom_call.1} parent=1 // pred_fallthru
      _
    %536 = vsyncpa [#allocation3], 1
    %537 = vsyncpa [#allocation6], 1
    %538 = vsyncpa [#allocation4], 1

</llo_original>
